<compile_context>
chip_gen: v5e
topology: v5e:2x2
jax: 0.10.0
libtpu: 0.0.40
codegen_flags: <defaults>
</compile_context>

<pallas_src>
import math

import jax
import jax.numpy as jnp
from jax import lax
from jax.experimental import pallas as pl
from jax.experimental.pallas import tpu as pltpu


LANES = 128                      # TPU lane width
FOLD_ROWS = 8                    # accumulator sublane height (one f32 vreg)
SUB_ROWS = 256                   # in-kernel fold granularity (rows / fori step)
STAGE_BYTES = 3 * 1024 * 1024    # input-window bytes per pipeline stage (x2 buffers)


def _round_up(x, m):
    return ((x + m - 1) // m) * m


def _num_tensorcores():
    """Best-effort TensorCore count (v7x has 2 per chip); defaults to 2."""
    try:
        info = pltpu.get_tpu_info()
    except Exception:
        return 2
    for name in ("num_tensorcores", "tensorcore_count", "num_cores",
                 "cores_per_chip", "core_count"):
        val = getattr(info, name, None)
        if isinstance(val, int) and 1 <= val <= 16:
            return val
    return 2


def _make_kernel(true_rows, block_rows, blocks_per_split, sub_rows, n_sub, lanes):
    """Accumulate sum(|fused - max(a, b)|) into a resident (FOLD_ROWS, lanes) block."""

    def kernel(a_ref, b_ref, f_ref, o_ref):
        p = pl.program_id(0)          # split axis ("parallel")
        i = pl.program_id(1)          # reduction axis ("arbitrary")

        @pl.when(i == 0)
        def _():
            o_ref[...] = jnp.zeros_like(o_ref)

        block_g = p * blocks_per_split + i
        row_start = block_g * block_rows
        # Hoisted once per grid step (JAX does not CSE broadcasts).
        row_iota = lax.broadcasted_iota(jnp.int32, (sub_rows, lanes), 0)

        def body(j, carry):
            start = pl.multiple_of(j * sub_rows, sub_rows)
            sl = pl.ds(start, sub_rows)
            a = a_ref[sl, :].astype(jnp.float32)
            b = b_ref[sl, :].astype(jnp.float32)
            f = f_ref[sl, :].astype(jnp.float32)
            d = jnp.abs(f - jnp.maximum(a, b))
            # Mask rows past the true row count (ragged / out-of-range blocks
            # read stale VMEM; jnp.where forces their contribution to 0).
            row_ids = row_start + j * sub_rows + row_iota
            d = jnp.where(row_ids < true_rows, d, 0.0)
            # Pure-VPU fold onto the (FOLD_ROWS, lanes) accumulator.
            o_ref[...] += d.reshape(-1, FOLD_ROWS, lanes).sum(axis=0)
            return carry

        lax.fori_loop(0, n_sub, body, 0)

    return kernel


def l_intensity_loss(image_a, image_b, image_fused):
    """Pallas implementation of L_Intensity.forward: mean(|fused - max(a, b)|)."""
    assert image_a.shape == image_b.shape == image_fused.shape
    shape = image_a.shape
    total = int(math.prod(shape)) if shape else 1
    if total == 0:
        return jnp.float32(jnp.nan)   # torch mean over an empty tensor is nan

    # Free (contiguous, row-major) 2-D view, native dtypes — no pad, no astype.
    if total % LANES == 0:
        rows, lanes = total // LANES, LANES
    elif len(shape) >= 2:
        lanes = shape[-1]
        rows = total // lanes
    else:
        rows, lanes = 1, total
    a2 = image_a.reshape(rows, lanes)
    b2 = image_b.reshape(rows, lanes)
    f2 = image_fused.reshape(rows, lanes)

    itemsizes = [jnp.dtype(x.dtype).itemsize for x in (a2, b2, f2)]
    align = max(FOLD_ROWS, 32 // min(itemsizes))   # 8 (f32), 16 (bf16), 32 (int8)

    cores = _num_tensorcores()
    num_splits = cores if rows >= cores * align else 1

    # Row-tile size from a VMEM byte budget (pipeline double-buffers it).
    lane_pad = _round_up(lanes, LANES)
    bytes_per_row = sum(lane_pad * s for s in itemsizes)
    max_rows = max(align, STAGE_BYTES // bytes_per_row)
    target = -(-rows // num_splits)
    if target >= SUB_ROWS and max_rows >= SUB_ROWS:
        sub_rows = SUB_ROWS
        block_rows = min((max_rows // SUB_ROWS) * SUB_ROWS,
                         _round_up(target, SUB_ROWS))
    else:
        block_rows = min(max(align, (max_rows // align) * align),
                         _round_up(target, align))
        sub_rows = block_rows
    n_sub = block_rows // sub_rows

    total_blocks = -(-rows // block_rows)
    blocks_per_split = -(-total_blocks // num_splits)

    def in_index(p, i, bps=blocks_per_split, nb=total_blocks):
        # Clamp so over-provisioned splits never DMA out of range; the
        # in-kernel row mask zeroes their contribution anyway.
        return (jnp.minimum(p * bps + i, nb - 1), 0)

    in_spec = pl.BlockSpec((block_rows, lanes), in_index)
    kernel = _make_kernel(rows, block_rows, blocks_per_split, sub_rows, n_sub, lanes)

    out_bytes = num_splits * FOLD_ROWS * lanes * 4
    cost = pl.CostEstimate(
        flops=4 * total,
        transcendentals=0,
        bytes_accessed=total * sum(itemsizes) + out_bytes,
    )

    partials = pl.pallas_call(
        kernel,
        out_shape=jax.ShapeDtypeStruct((num_splits * FOLD_ROWS, lanes), jnp.float32),
        grid=(num_splits, blocks_per_split),
        in_specs=[in_spec, in_spec, in_spec],
        out_specs=pl.BlockSpec((FOLD_ROWS, lanes), lambda p, i: (p, 0)),
        compiler_params=pltpu.CompilerParams(
            dimension_semantics=("parallel", "arbitrary"),
        ),
        cost_estimate=cost,
    )(a2, b2, f2)

    # mean = sum / N  (true element count; masked rows contributed exactly 0).
    return (jnp.sum(partials) / jnp.float32(total)).astype(jnp.float32)


if __name__ == "__main__":
    key = jax.random.PRNGKey(0)
    k1, k2, k3, k4, k5, k6 = jax.random.split(key, 6)

    # Primary case: NCHW images, batch=2, channels=4, spatial=16x16.
    shape = (2, 4, 16, 16)
    a = jax.random.uniform(k1, shape, dtype=jnp.float32)
    b = jax.random.uniform(k2, shape, dtype=jnp.float32)
    f = jax.random.uniform(k3, shape, dtype=jnp.float32)
    loss = jax.block_until_ready(l_intensity_loss(a, b, f))
    ref = jnp.mean(jnp.abs(f - jnp.maximum(a, b)))
    assert jnp.allclose(loss, ref, rtol=1e-5, atol=1e-6), (loss, ref)

    # Ragged case: row count not divisible by the row tile -> exercises the
    # in-kernel mask path (no padding copies anywhere).
    shape2 = (2, 4, 20, 16)
    a2 = jax.random.uniform(k4, shape2, dtype=jnp.float32)
    b2 = jax.random.uniform(k5, shape2, dtype=jnp.float32)
    f2 = jax.random.uniform(k6, shape2, dtype=jnp.float32)
    loss2 = jax.block_until_ready(l_intensity_loss(a2, b2, f2))
    ref2 = jnp.mean(jnp.abs(f2 - jnp.maximum(a2, b2)))
    assert jnp.allclose(loss2, ref2, rtol=1e-5, atol=1e-6), (loss2, ref2)

    print("KERNEL_OK")
</pallas_src>

<mosaic_0001>
module attributes {stable_mosaic.version = 11 : i64} {
  func.func @kernel(%arg0: i32, %arg1: i32, %arg2: memref<8x128xf32, #tpu.memory_space<vmem>>, %arg3: memref<8x128xf32, #tpu.memory_space<vmem>>, %arg4: memref<8x128xf32, #tpu.memory_space<vmem>>, %arg5: memref<8x128xf32, #tpu.memory_space<vmem>>) attributes {dimension_semantics = [#tpu.dimension_semantics<parallel>, #tpu.dimension_semantics<arbitrary>], iteration_bounds = array<i64: 2, 1>, scalar_prefetch = 0 : i64, scratch_operands = 0 : i64, tpu.core_type = #tpu.core_type<tc>, window_params = [{transform_indices = @transform_0, window_bounds = array<i64: 8, 128>}, {transform_indices = @transform_1, window_bounds = array<i64: 8, 128>}, {transform_indices = @transform_2, window_bounds = array<i64: 8, 128>}, {transform_indices = @transform_3, window_bounds = array<i64: 8, 128>}]} {
    %c0_i32 = arith.constant 0 : i32
    %0 = arith.cmpi eq, %arg1, %c0_i32 : i32
    %1 = arith.extui %0 : i1 to i32
    %c0_i32_0 = arith.constant 0 : i32
    %2 = arith.cmpi ne, %1, %c0_i32_0 : i32
    scf.if %2 {
      %cst_12 = arith.constant 0.000000e+00 : f32
      %31 = vector.broadcast %cst_12 : f32 to vector<8x128xf32>
      %c0_13 = arith.constant 0 : index
      %c0_14 = arith.constant 0 : index
      %32 = vector.load %arg5[%c0_13, %c0_14] : memref<8x128xf32, #tpu.memory_space<vmem>>, vector<8x128xf32>
      tpu.vector_store %arg5[%c0_13, %c0_14], %31 {strides = array<i32>} : memref<8x128xf32, #tpu.memory_space<vmem>>, vector<8x128xf32>,
    } else {
    }
    %c1_i32 = arith.constant 1 : i32
    %3 = arith.muli %arg0, %c1_i32 : i32
    %4 = arith.addi %3, %arg1 : i32
    %c8_i32 = arith.constant 8 : i32
    %5 = arith.muli %4, %c8_i32 : i32
    %6 = tpu.iota {dimensions = array<i32: 0>} : vector<8x128xi32>
    %c0_i32_1 = arith.constant 0 : i32
    %c8_i32_2 = arith.constant 8 : i32
    %7 = arith.muli %c0_i32_1, %c8_i32_2 : i32
    %8 = tpu.assume_multiple %7, 8 : i32
    %9 = arith.index_cast %8 : i32 to index
    %c0 = arith.constant 0 : index
    %10 = vector.load %arg2[%9, %c0] : memref<8x128xf32, #tpu.memory_space<vmem>>, vector<8x128xf32>
    %11 = arith.index_cast %8 : i32 to index
    %c0_3 = arith.constant 0 : index
    %12 = vector.load %arg3[%11, %c0_3] : memref<8x128xf32, #tpu.memory_space<vmem>>, vector<8x128xf32>
    %13 = arith.index_cast %8 : i32 to index
    %c0_4 = arith.constant 0 : index
    %14 = vector.load %arg4[%13, %c0_4] : memref<8x128xf32, #tpu.memory_space<vmem>>, vector<8x128xf32>
    %15 = arith.maximumf %10, %12 : vector<8x128xf32>
    %16 = arith.subf %14, %15 : vector<8x128xf32>
    %17 = math.absf %16 : vector<8x128xf32>
    %c8_i32_5 = arith.constant 8 : i32
    %18 = arith.muli %c0_i32_1, %c8_i32_5 : i32
    %19 = arith.addi %5, %18 : i32
    %20 = vector.broadcast %19 : i32 to vector<8x128xi32>
    %21 = arith.addi %20, %6 : vector<8x128xi32>
    %c16_i32 = arith.constant 16 : i32
    %22 = vector.broadcast %c16_i32 : i32 to vector<8x128xi32>
    %23 = arith.cmpi slt, %21, %22 : vector<8x128xi32>
    %cst = arith.constant 0.000000e+00 : f32
    %24 = vector.broadcast %cst : f32 to vector<8x128xf32>
    %25 = arith.select %23, %17, %24 : vector<8x128xi1>, vector<8x128xf32>
    %c0_6 = arith.constant 0 : index
    %c0_7 = arith.constant 0 : index
    %26 = vector.load %arg5[%c0_6, %c0_7] : memref<8x128xf32, #tpu.memory_space<vmem>>, vector<8x128xf32>
    %27 = vector.shape_cast %25 : vector<8x128xf32> to vector<1x8x128xf32>
    %cst_8 = arith.constant dense<0.000000e+00> : vector<8x128xf32>
    %28 = vector.multi_reduction <add>, %27, %cst_8 [0] : vector<1x8x128xf32> to vector<8x128xf32>
    %29 = arith.addf %26, %28 : vector<8x128xf32>
    %c0_9 = arith.constant 0 : index
    %c0_10 = arith.constant 0 : index
    %30 = vector.load %arg5[%c0_9, %c0_10] : memref<8x128xf32, #tpu.memory_space<vmem>>, vector<8x128xf32>
    tpu.vector_store %arg5[%c0_9, %c0_10], %29 {strides = array<i32>} : memref<8x128xf32, #tpu.memory_space<vmem>>, vector<8x128xf32>,
    %c1_i32_11 = arith.constant 1 : i32
    return
  }
  func.func @transform_0(%arg0: i32, %arg1: i32) -> (i32, i32) {
    %c1_i32 = arith.constant 1 : i32
    %0 = arith.muli %arg0, %c1_i32 : i32
    %1 = arith.addi %0, %arg1 : i32
    %c1_i32_0 = arith.constant 1 : i32
    %2 = arith.minsi %1, %c1_i32_0 : i32
    %c0_i32 = arith.constant 0 : i32
    %c0_i32_1 = arith.constant 0 : i32
    return %2, %c0_i32 : i32, i32
  }
  func.func @transform_1(%arg0: i32, %arg1: i32) -> (i32, i32) {
    %c1_i32 = arith.constant 1 : i32
    %0 = arith.muli %arg0, %c1_i32 : i32
    %1 = arith.addi %0, %arg1 : i32
    %c1_i32_0 = arith.constant 1 : i32
    %2 = arith.minsi %1, %c1_i32_0 : i32
    %c0_i32 = arith.constant 0 : i32
    %c0_i32_1 = arith.constant 0 : i32
    return %2, %c0_i32 : i32, i32
  }
  func.func @transform_2(%arg0: i32, %arg1: i32) -> (i32, i32) {
    %c1_i32 = arith.constant 1 : i32
    %0 = arith.muli %arg0, %c1_i32 : i32
    %1 = arith.addi %0, %arg1 : i32
    %c1_i32_0 = arith.constant 1 : i32
    %2 = arith.minsi %1, %c1_i32_0 : i32
    %c0_i32 = arith.constant 0 : i32
    %c0_i32_1 = arith.constant 0 : i32
    return %2, %c0_i32 : i32, i32
  }
  func.func @transform_3(%arg0: i32, %arg1: i32) -> (i32, i32) {
    %c0_i32 = arith.constant 0 : i32
    %c0_i32_0 = arith.constant 0 : i32
    return %arg0, %c0_i32 : i32, i32
  }
}

</mosaic_0001>

<llo_original>
// kernel: tpu_custom_call.1
$region0: #{tpu_custom_call.1}
  #allocation0 [shape = 'u32[]', space=smem, size = 0x4, offset = 0x4, fixed_abs, tag = 'smem constant byte address 0x4 - core index']
  #allocation1 [shape = 'u32[72,128]{1,0:T(1,128)}', space=vmem, size = 0x9000, scoped, tag = 'internal scratch']
  %s0 = inlined_call_operand.hbm [shape: f32[16,128], index: 0, kind: input, shape index: {}]
  %s1 = inlined_call_operand.hbm [shape: f32[16,128], index: 1, kind: input, shape index: {}]
  %s2 = inlined_call_operand.hbm [shape: f32[16,128], index: 2, kind: input, shape index: {}]
  %s3 = inlined_call_operand.hbm [shape: f32[16,128], index: 3, kind: output, shape index: {}]
  %s4 = sld [smem:[#allocation0]]
  $region61: #{tpu_custom_call.1} parent=0
    _
  %s6 = ssub.s32 1, %s4
  %s7 = scalar_select 0, %s6, %s4
  $region1: #{tpu_custom_call.1} parent=0
    #allocation2 [shape = 'u8[8192]{0}', space=vmem, size = 0x2000, scoped, tag = 'input window, operand 0']
    #allocation3 [shape = 's32[2]{0}', space=sflag, size = 0x8, scoped, tag = 'scoped memory for tpu_custom_call.1']
    #allocation4 [shape = 's32[2]{0}', space=sflag, size = 0x8, scoped, tag = 'scoped memory for tpu_custom_call.1']
    #allocation5 [shape = 'u8[8192]{0}', space=vmem, size = 0x2000, scoped, tag = 'input window, operand 1']
    #allocation6 [shape = 's32[2]{0}', space=sflag, size = 0x8, scoped, tag = 'scoped memory for tpu_custom_call.1']
    #allocation7 [shape = 'u8[8192]{0}', space=vmem, size = 0x2000, scoped, tag = 'input window, operand 2']
    #allocation8 [shape = 'u8[8192]{0}', space=vmem, size = 0x2000, scoped, tag = 'output window, operand 0']
    %8 = vsyncpa [#allocation3], 0
    %s9 = scalar_lea.sflag [#allocation3], 1
    %10 = vsyncpa %s9, 0
    %11 = vsyncpa [#allocation6], 0
    %s12 = scalar_lea.sflag [#allocation6], 1
    %13 = vsyncpa %s12, 0
    %14 = vsyncpa [#allocation4], 0
    %s15 = scalar_lea.sflag [#allocation4], 1
    %16 = vsyncpa %s15, 0
    loop: start=0, step=1, limit=4
    $region2: #{tpu_custom_call.1} parent=1 // loop_pre_header
      _
    $region3: #{tpu_custom_call.1} parent=1 // loop_header
      %s18 = sphi 0, %s22
      %p19 = scmp.ge.s32.totalorder %s18, 4
      %s25 = sphi 0, %s37
      %s26 = sphi 0, %s33
      %s27 = sphi 0, %s25
      %s28 = sphi 0, %s26
      %s29 = sphi 0, %s27
      %s30 = sphi 0, %s28
      %s46 = sphi 0, %s48
      %s49 = sphi 0, %s46
      %s50 = sphi 0, %s49
      %s66 = sphi 0, %s50
      %s78 = sphi 0, %s80
      %s81 = sphi 0, %s78
      %s82 = sphi 0, %s81
      %s98 = sphi 0, %s82
      %s110 = sphi 0, %s112
      %s113 = sphi 0, %s110
      %s114 = sphi 0, %s113
      %s130 = sphi 0, %s114
      %s136 = sphi 0, %s138
      %s139 = sphi 0, %s136
      %s140 = sphi 0, %s139
      %s156 = sphi 0, %s140
    $region4: #{tpu_custom_call.1} parent=1 // loop_header_branch
      %21 = sbr.rel (%p19) target = $region8
    $region5: #{tpu_custom_call.1} parent=1 // loop_body
      %s23 = ssub.s32 %s18, 1
      %s24 = ssub.s32 %s18, 2
      %s31 = sadd.s32 1, %s26
      %p32 = scmp.ge.s32.totalorder %s31, 1
      %s33 = scalar_select %p32, 0, %s31
      %s34 = sadd.s32 1, %s25
      %s35 = scalar_select %p32, %s34, %s25
      %p36 = scmp.ge.s32.totalorder %s35, 2
      %s37 = scalar_select %p36, 0, %s35
      %s38 = sadd.s32 %s25, %s26
      %p39 = scmp.lt.s32.totalorder %s38, 1
      %s40 = scalar_select %p39, %s38, 1
      %s41 = sadd.s32 %s37, %s33
      %p42 = scmp.lt.s32.totalorder %s41, 1
      %s43 = scalar_select %p42, %s41, 1
      %s44 = ssub.s32 %s40, %s43
      %p45 = scmp.eq.s32.totalorder %s44, 0
      %s47 = sadd.s32 %s46, 1
      %s48 = scalar_select %p45, %s46, %s47
      %p51 = pneg %p45
      %p52 = scmp.eq.s32.totalorder %s18, 1
      %p53 = por %p51, %p52
      %p54 = scmp.ne.s32.totalorder %s46, %s49
      %p55 = scmp.eq.s32.totalorder %s18, 0
      %p56 = por %p54, %p55
      %p57 = scmp.ne.s32.totalorder %s46, %s49
      %p58 = scmp.eq.s32.totalorder %s23, 1
      %p59 = por %p57, %p58
      %p60 = scmp.ne.s32.totalorder %s49, %s50
      %p61 = scmp.eq.s32.totalorder %s23, 0
      %p62 = por %p60, %p61
      %p63 = scmp.ne.s32.totalorder %s49, %s50
      %p64 = scmp.eq.s32.totalorder %s24, 1
      %p65 = por %p63, %p64
      %p67 = scmp.ne.s32.totalorder %s50, %s66
      %p68 = scmp.eq.s32.totalorder %s24, 0
      %p69 = por %p67, %p68
      %s70 = sadd.s32 %s25, %s26
      %p71 = scmp.lt.s32.totalorder %s70, 1
      %s72 = scalar_select %p71, %s70, 1
      %s73 = sadd.s32 %s37, %s33
      %p74 = scmp.lt.s32.totalorder %s73, 1
      %s75 = scalar_select %p74, %s73, 1
      %s76 = ssub.s32 %s72, %s75
      %p77 = scmp.eq.s32.totalorder %s76, 0
      %s79 = sadd.s32 %s78, 1
      %s80 = scalar_select %p77, %s78, %s79
      %p83 = pneg %p77
      %p84 = scmp.eq.s32.totalorder %s18, 1
      %p85 = por %p83, %p84
      %p86 = scmp.ne.s32.totalorder %s78, %s81
      %p87 = scmp.eq.s32.totalorder %s18, 0
      %p88 = por %p86, %p87
      %p89 = scmp.ne.s32.totalorder %s78, %s81
      %p90 = scmp.eq.s32.totalorder %s23, 1
      %p91 = por %p89, %p90
      %p92 = scmp.ne.s32.totalorder %s81, %s82
      %p93 = scmp.eq.s32.totalorder %s23, 0
      %p94 = por %p92, %p93
      %p95 = scmp.ne.s32.totalorder %s81, %s82
      %p96 = scmp.eq.s32.totalorder %s24, 1
      %p97 = por %p95, %p96
      %p99 = scmp.ne.s32.totalorder %s82, %s98
      %p100 = scmp.eq.s32.totalorder %s24, 0
      %p101 = por %p99, %p100
      %s102 = sadd.s32 %s25, %s26
      %p103 = scmp.lt.s32.totalorder %s102, 1
      %s104 = scalar_select %p103, %s102, 1
      %s105 = sadd.s32 %s37, %s33
      %p106 = scmp.lt.s32.totalorder %s105, 1
      %s107 = scalar_select %p106, %s105, 1
      %s108 = ssub.s32 %s104, %s107
      %p109 = scmp.eq.s32.totalorder %s108, 0
      %s111 = sadd.s32 %s110, 1
      %s112 = scalar_select %p109, %s110, %s111
      %p115 = pneg %p109
      %p116 = scmp.eq.s32.totalorder %s18, 1
      %p117 = por %p115, %p116
      %p118 = scmp.ne.s32.totalorder %s110, %s113
      %p119 = scmp.eq.s32.totalorder %s18, 0
      %p120 = por %p118, %p119
      %p121 = scmp.ne.s32.totalorder %s110, %s113
      %p122 = scmp.eq.s32.totalorder %s23, 1
      %p123 = por %p121, %p122
      %p124 = scmp.ne.s32.totalorder %s113, %s114
      %p125 = scmp.eq.s32.totalorder %s23, 0
      %p126 = por %p124, %p125
      %p127 = scmp.ne.s32.totalorder %s113, %s114
      %p128 = scmp.eq.s32.totalorder %s24, 1
      %p129 = por %p127, %p128
      %p131 = scmp.ne.s32.totalorder %s114, %s130
      %p132 = scmp.eq.s32.totalorder %s24, 0
      %p133 = por %p131, %p132
      %s134 = ssub.s32 %s25, %s37
      %p135 = scmp.eq.s32.totalorder %s134, 0
      %s137 = sadd.s32 %s136, 1
      %s138 = scalar_select %p135, %s136, %s137
      %p141 = pneg %p135
      %p142 = scmp.eq.s32.totalorder %s18, 1
      %p143 = por %p141, %p142
      %p144 = scmp.ne.s32.totalorder %s136, %s139
      %p145 = scmp.eq.s32.totalorder %s18, 0
      %p146 = por %p144, %p145
      %p147 = scmp.ne.s32.totalorder %s136, %s139
      %p148 = scmp.eq.s32.totalorder %s23, 1
      %p149 = por %p147, %p148
      %p150 = scmp.ne.s32.totalorder %s139, %s140
      %p151 = scmp.eq.s32.totalorder %s23, 0
      %p152 = por %p150, %p151
      %p153 = scmp.ne.s32.totalorder %s139, %s140
      %p154 = scmp.eq.s32.totalorder %s24, 1
      %p155 = por %p153, %p154
      %p157 = scmp.ne.s32.totalorder %s140, %s156
      %p158 = scmp.eq.s32.totalorder %s24, 0
      %p159 = por %p157, %p158
      %p160 = scmp.le.s32.totalorder 1, %s18
      %p161 = scmp.lt.s32.totalorder %s18, 3
      %p162 = pnand %p160, %p161
      %p163 = pneg %p162
      // Predicated region
      $region9: #{tpu_custom_call.1} parent=5 // pred_check
        _
      $region10: #{tpu_custom_call.1} parent=5 // pred_check_branch
        %165 = sbr.rel (%p162) target = $region12
      $region11: #{tpu_custom_call.1} parent=5 // pred_region
        %s166 = ssub.s32 %s18, 1
      $region12: #{tpu_custom_call.1} parent=5 // pred_fallthru
        _
      %p167 = scmp.lt.s32.totalorder %s18, 2
      // Predicated region
      $region13: #{tpu_custom_call.1} parent=5 // pred_check
        %p168 = pneg %p167
      $region14: #{tpu_custom_call.1} parent=5 // pred_check_branch
        %170 = sbr.rel (%p168) target = $region16
      $region15: #{tpu_custom_call.1} parent=5 // pred_region
        // Predicated region
        $region17: #{tpu_custom_call.1} parent=15 // pred_check
          %p171 = pneg %p56
        $region18: #{tpu_custom_call.1} parent=15 // pred_check_branch
          %173 = sbr.rel (%p171) target = $region20
        $region19: #{tpu_custom_call.1} parent=15 // pred_region
          %s174 = sand.u32 %s46, 1
          %s175 = scalar_lea.sflag [#allocation3], %s174
          %s176 = sand.u32 %s46, 1
          %s177 = smul.addr %s176, 8
          %s178 = scalar_lea.vmem [#allocation2], %s177
          %s179 = sadd.s32 %s25, %s26
          %p180 = scmp.lt.s32.totalorder %s179, 1
          %s181 = scalar_select %p180, %s179, 1
          %183 = vsyncadd %s175, 0
          %s184 = smul.addr %s181, 8
          %s185 = scalar_lea.hbm %s0, %s184
          %s187 = sshll.u32 %s185, 4
          %s188 = int_to_ptr.hbm [resolvable:$true] %s187
          %s189 = sshll.u32 %s178, 4
          %s190 = int_to_ptr.vmem [resolvable:$true] %s189
          %192 = dma.hbm_to_vmem [thread:$0]  %s188, 128, %s190, %s175
        $region20: #{tpu_custom_call.1} parent=15 // pred_fallthru
          _
        // Predicated region
        $region21: #{tpu_custom_call.1} parent=15 // pred_check
          %p193 = pneg %p88
        $region22: #{tpu_custom_call.1} parent=15 // pred_check_branch
          %195 = sbr.rel (%p193) target = $region24
        $region23: #{tpu_custom_call.1} parent=15 // pred_region
          %s196 = sand.u32 %s18, 1
          %s197 = scalar_lea.sflag [#allocation6], %s196
          %s198 = sand.u32 %s78, 1
          %s199 = smul.addr %s198, 8
          %s200 = scalar_lea.vmem [#allocation5], %s199
          %s201 = sadd.s32 %s25, %s26
          %p202 = scmp.lt.s32.totalorder %s201, 1
          %s203 = scalar_select %p202, %s201, 1
          %205 = vsyncadd %s197, 0
          %s206 = smul.addr %s203, 8
          %s207 = scalar_lea.hbm %s1, %s206
          %s209 = sshll.u32 %s207, 4
          %s210 = int_to_ptr.hbm [resolvable:$true] %s209
          %s211 = sshll.u32 %s200, 4
          %s212 = int_to_ptr.vmem [resolvable:$true] %s211
          %214 = dma.hbm_to_vmem [thread:$0]  %s210, 128, %s212, %s197
        $region24: #{tpu_custom_call.1} parent=15 // pred_fallthru
          _
        // Predicated region
        $region25: #{tpu_custom_call.1} parent=15 // pred_check
          %p215 = pneg %p120
        $region26: #{tpu_custom_call.1} parent=15 // pred_check_branch
          %217 = sbr.rel (%p215) target = $region28
        $region27: #{tpu_custom_call.1} parent=15 // pred_region
          %s218 = sand.u32 %s18, 1
          %s219 = scalar_lea.sflag [#allocation6], %s218
          %s220 = sand.u32 %s110, 1
          %s221 = smul.addr %s220, 8
          %s222 = scalar_lea.vmem [#allocation7], %s221
          %s223 = sadd.s32 %s25, %s26
          %p224 = scmp.lt.s32.totalorder %s223, 1
          %s225 = scalar_select %p224, %s223, 1
          %227 = vsyncadd %s219, 0
          %s228 = smul.addr %s225, 8
          %s229 = scalar_lea.hbm %s2, %s228
          %s231 = sshll.u32 %s229, 4
          %s232 = int_to_ptr.hbm [resolvable:$true] %s231
          %s233 = sshll.u32 %s222, 4
          %s234 = int_to_ptr.vmem [resolvable:$true] %s233
          %236 = dma.hbm_to_vmem [thread:$0]  %s232, 128, %s234, %s219
        $region28: #{tpu_custom_call.1} parent=15 // pred_fallthru
          _
      $region16: #{tpu_custom_call.1} parent=5 // pred_fallthru
        _
      %p237 = scmp.le.s32.totalorder 1, %s18
      %p238 = scmp.lt.s32.totalorder %s18, 3
      %p239 = pnand %p237, %p238
      %p240 = pneg %p239
      // Predicated region
      $region29: #{tpu_custom_call.1} parent=5 // pred_check
        _
      $region30: #{tpu_custom_call.1} parent=5 // pred_check_branch
        %242 = sbr.rel (%p239) target = $region32
      $region31: #{tpu_custom_call.1} parent=5 // pred_region
        %s243 = ssub.s32 %s18, 1
        %s244 = sand.u32 %s49, 1
        %s245 = scalar_lea.sflag [#allocation3], %s244
        %s246 = sand.u32 %s49, 1
        %s247 = smul.addr %s246, 8
        %s248 = scalar_lea.vmem [#allocation2], %s247
        // Predicated region
        $region33: #{tpu_custom_call.1} parent=31 // pred_check
          %p249 = pneg %p62
        $region34: #{tpu_custom_call.1} parent=31 // pred_check_branch
          %251 = sbr.rel (%p249) target = $region36
        $region35: #{tpu_custom_call.1} parent=31 // pred_region
          %253 = dma.done %s245, 128
        $region36: #{tpu_custom_call.1} parent=31 // pred_fallthru
          _
        %s254 = sand.u32 %s23, 1
        %s255 = scalar_lea.sflag [#allocation6], %s254
        %s256 = sand.u32 %s81, 1
        %s257 = smul.addr %s256, 8
        %s258 = scalar_lea.vmem [#allocation5], %s257
        // Predicated region
        $region37: #{tpu_custom_call.1} parent=31 // pred_check
          %p259 = pneg %p94
        $region38: #{tpu_custom_call.1} parent=31 // pred_check_branch
          %261 = sbr.rel (%p259) target = $region40
        $region39: #{tpu_custom_call.1} parent=31 // pred_region
          %263 = dma.done %s255, 128
        $region40: #{tpu_custom_call.1} parent=31 // pred_fallthru
          _
        %s264 = sand.u32 %s23, 1
        %s265 = scalar_lea.sflag [#allocation6], %s264
        %s266 = sand.u32 %s113, 1
        %s267 = smul.addr %s266, 8
        %s268 = scalar_lea.vmem [#allocation7], %s267
        // Predicated region
        $region41: #{tpu_custom_call.1} parent=31 // pred_check
          %p269 = pneg %p126
        $region42: #{tpu_custom_call.1} parent=31 // pred_check_branch
          %271 = sbr.rel (%p269) target = $region44
        $region43: #{tpu_custom_call.1} parent=31 // pred_region
          %273 = dma.done %s265, 128
        $region44: #{tpu_custom_call.1} parent=31 // pred_fallthru
          _
        %s274 = sand.u32 %s49, 1
        %s275 = scalar_lea.sflag [#allocation3], %s274
        %s276 = sand.u32 %s49, 1
        %s277 = smul.addr %s276, 8
        %s278 = scalar_lea.vmem [#allocation2], %s277
        %p279 = pneg %p62
        %p280 = pneg %p59
        %s281 = sand.u32 %s23, 1
        %s282 = scalar_lea.sflag [#allocation6], %s281
        %s283 = sand.u32 %s81, 1
        %s284 = smul.addr %s283, 8
        %s285 = scalar_lea.vmem [#allocation5], %s284
        %p286 = pneg %p94
        %p287 = pneg %p91
        %s288 = sand.u32 %s23, 1
        %s289 = scalar_lea.sflag [#allocation6], %s288
        %s290 = sand.u32 %s113, 1
        %s291 = smul.addr %s290, 8
        %s292 = scalar_lea.vmem [#allocation7], %s291
        %p293 = pneg %p126
        %p294 = pneg %p123
        %p295 = pneg %p152
        %p296 = pneg %p149
        %s297 = sand.u32 %s139, 1
        %s298 = scalar_lea.sflag [#allocation4], %s297
        %s299 = sand.u32 %s139, 1
        %s300 = smul.addr %s299, 8
        %s301 = scalar_lea.vmem [#allocation8], %s300
        %s302 = sadd.s32 %s27, %s28
        %p303 = scmp.lt.s32.totalorder %s302, 1
        %s304 = scalar_select %p303, %s302, 1
        %s305 = sadd.s32 %s27, %s28
        %p306 = scmp.lt.s32.totalorder %s305, 1
        %s307 = scalar_select %p306, %s305, 1
        %s308 = sadd.s32 %s27, %s28
        %p309 = scmp.lt.s32.totalorder %s308, 1
        %s310 = scalar_select %p309, %s308, 1
        %p311 = scmp.eq.s32.totalorder %s28, 0
        // Predicated region
        $region45: #{tpu_custom_call.1} parent=31 // pred_check
          %p312 = pneg %p311
        $region46: #{tpu_custom_call.1} parent=31 // pred_check_branch
          %314 = sbr.rel (%p312) target = $region48
        $region47: #{tpu_custom_call.1} parent=31 // pred_region
          %315 = vst [vmem:[%s301] sm:$0xff] 0.0
        $region48: #{tpu_custom_call.1} parent=31 // pred_fallthru
          _
        %s316 = sadd.s32 %s27, %s28
        %s317 = smul.u32 %s316, 8
        %v318 = vlaneseq
        %v319 = vshrl.u32 %v318, 7
        %v320 = vld [vmem:[%s248] sm:$0xff]
        %v321 = vld [vmem:[%s258] sm:$0xff]
        %v322 = vld [vmem:[%s268] sm:$0xff]
        %v323 = vmax.f32 %v320, %v321
        %v324 = vsub.f32 %v322, %v323
        %v325 = vand.u32 2147483647, %v324
        %v326 = vstv %s317
        %v327 = vadd.s32 %v326, %v319
        %vm328 = vcmp.lt.s32.totalorder %v327, 16
        %v329 = vsel %vm328, %v325, 0.0
        %v330 = vld [vmem:[%s301] sm:$0xff]
        %v331 = vadd.f32 %v329, 0.0
        %v332 = vadd.f32 %v330, %v331
        %333 = vst [vmem:[%s301] sm:$0xff] %v332
        %s334 = sand.u32 %s139, 1
        %s335 = scalar_lea.sflag [#allocation4], %s334
        %s336 = sand.u32 %s139, 1
        %s337 = smul.addr %s336, 8
        %s338 = scalar_lea.vmem [#allocation8], %s337
        // Predicated region
        $region49: #{tpu_custom_call.1} parent=31 // pred_check
          %p339 = pneg %p149
        $region50: #{tpu_custom_call.1} parent=31 // pred_check_branch
          %341 = sbr.rel (%p339) target = $region52
        $region51: #{tpu_custom_call.1} parent=31 // pred_region
          %343 = vsyncadd %s335, 0
          %s344 = smul.addr %s27, 8
          %s345 = scalar_lea.hbm %s3, %s344
          %s347 = sshll.u32 %s338, 4
          %s348 = int_to_ptr.vmem [resolvable:$true] %s347
          %s349 = sshll.u32 %s345, 4
          %s350 = int_to_ptr.hbm [resolvable:$true] %s349
          %352 = dma.vmem_to_hbm [thread:$0]  %s348, 128, %s350, %s335
        $region52: #{tpu_custom_call.1} parent=31 // pred_fallthru
          _
      $region32: #{tpu_custom_call.1} parent=5 // pred_fallthru
        _
      %p353 = scmp.le.s32.totalorder 2, %s18
      // Predicated region
      $region53: #{tpu_custom_call.1} parent=5 // pred_check
        %p354 = pneg %p353
      $region54: #{tpu_custom_call.1} parent=5 // pred_check_branch
        %356 = sbr.rel (%p354) target = $region56
      $region55: #{tpu_custom_call.1} parent=5 // pred_region
        %s357 = ssub.s32 %s18, 2
        // Predicated region
        $region57: #{tpu_custom_call.1} parent=55 // pred_check
          %p358 = pneg %p155
        $region58: #{tpu_custom_call.1} parent=55 // pred_check_branch
          %360 = sbr.rel (%p358) target = $region60
        $region59: #{tpu_custom_call.1} parent=55 // pred_region
          %s361 = sand.u32 %s140, 1
          %s362 = scalar_lea.sflag [#allocation4], %s361
          %s363 = sand.u32 %s140, 1
          %s364 = smul.addr %s363, 8
          %s365 = scalar_lea.vmem [#allocation8], %s364
          %367 = dma.done %s362, 128
        $region60: #{tpu_custom_call.1} parent=55 // pred_fallthru
          _
      $region56: #{tpu_custom_call.1} parent=5 // pred_fallthru
        _
    $region6: #{tpu_custom_call.1} parent=1 // loop_footer
      %s22 = sadd.s32 1, %s18
    $region7: #{tpu_custom_call.1} parent=1 // loop_footer_branch
      %17 = sbr.rel target = $region3
    $region8: #{tpu_custom_call.1} parent=1 // loop_exit
      _
    %368 = vsyncpa [#allocation3], 1
    %s369 = scalar_lea.sflag [#allocation3], 1
    %370 = vsyncpa %s369, 1
    %371 = vsyncpa [#allocation6], 1
    %s372 = scalar_lea.sflag [#allocation6], 1
    %373 = vsyncpa %s372, 1
    %374 = vsyncpa [#allocation4], 1
    %s375 = scalar_lea.sflag [#allocation4], 1
    %376 = vsyncpa %s375, 1

</llo_original>
